<compile_context>
chip_gen: v5e
topology: v5e:2x2
jax: 0.10.0
libtpu: 0.0.40
codegen_flags: <defaults>
</compile_context>

<pallas_src>
import functools
import math

import jax
import jax.numpy as jnp
from jax import lax
from jax.experimental import pallas as pl
from jax.experimental.pallas import tpu as pltpu


_INV_SQRT2 = 1.0 / math.sqrt(2.0)
_SQRT_2_OVER_PI = math.sqrt(2.0 / math.pi)


def _round_up(x, m):
    return ((x + m - 1) // m) * m


def _gelu(h, approximate):
    if approximate:
        # tanh approximation -> EUP slot instead of a long VALU erf polynomial.
        return 0.5 * h * (1.0 + jnp.tanh(_SQRT_2_OVER_PI * (h + 0.044715 * h * h * h)))
    return 0.5 * h * (1.0 + lax.erf(h * _INV_SQRT2))


# --------------------------------------------------------------------------
# Kernels
# --------------------------------------------------------------------------
def _projector_kernel_fused(x_ref, w1_ref, b1_ref, w2_ref, b2_ref, o_ref, *,
                            compute_dtype, approximate):
    """Fast path: whole hidden & out dims fit in one chunk (gk == gn == 1)."""
    h = jnp.dot(x_ref[...], w1_ref[...], preferred_element_type=jnp.float32)
    h = _gelu(h + b1_ref[...], approximate)
    y = jnp.dot(h.astype(compute_dtype), w2_ref[...],
                preferred_element_type=jnp.float32)
    o_ref[...] = (y + b2_ref[...]).astype(o_ref.dtype)


def _projector_kernel_tiled(x_ref, w1_ref, b1_ref, w2_ref, b2_ref, o_ref,
                            h_ref, acc_ref, *, tk, tn, compute_dtype, approximate):
    """General path: grid = (row tile, hidden chunk k, out chunk n), n innermost."""
    k = pl.program_id(1)
    n = pl.program_id(2)
    nk = pl.num_programs(1)

    # fc1 + GELU for hidden chunk k is computed ONCE per (row tile, k) and
    # cached in VMEM; it is reused for every output chunk n (no recompute,
    # no re-stream of w1 across the out axis).
    @pl.when(n == 0)
    def _fc1():
        koff = pl.multiple_of(k * tk, 128)
        h = jnp.dot(x_ref[...], w1_ref[...], preferred_element_type=jnp.float32)
        h = _gelu(h + b1_ref[:, pl.ds(koff, tk)], approximate)
        h_ref[...] = h.astype(h_ref.dtype)

    noff = pl.multiple_of(n * tn, 128)
    nsl = pl.ds(noff, tn)
    partial = jnp.dot(h_ref[...], w2_ref[...], preferred_element_type=jnp.float32)

    @pl.when(k == 0)
    def _init():
        acc_ref[:, nsl] = partial

    @pl.when(k != 0)
    def _accum():
        acc_ref[:, nsl] += partial

    @pl.when(k == nk - 1)
    def _finalize():
        # b2 added once per output chunk, fused with the final store.  The
        # output block spans the full out dim -> single HBM writeback per tile.
        o_ref[:, nsl] = (acc_ref[:, nsl] + b2_ref[:, nsl]).astype(o_ref.dtype)


# --------------------------------------------------------------------------
# Parameter preparation (hoisted out of the per-call hot path)
# --------------------------------------------------------------------------
def init_projector_params(w1, b1, w2, b2, *, compute_dtype=None):
    """Pad (lane-dense, multiples of 128) and optionally cast the weights once.

    w1: (in_features, hidden)   b1: (hidden,)        -- transpose of torch layout
    w2: (hidden, out_features)  b2: (out_features,)
    compute_dtype: e.g. jnp.bfloat16 for the fast MXU path (biases / accumulation
    stay f32).  None keeps the weights' dtype (exact f32 path).
    """
    in_features, hidden = w1.shape
    out_features = w2.shape[1]
    in_p = _round_up(in_features, 128)
    hid_p = _round_up(hidden, 128)
    out_p = _round_up(out_features, 128)

    cdt = jnp.dtype(compute_dtype) if compute_dtype is not None else jnp.dtype(w1.dtype)

    w1_p = jnp.pad(w1, ((0, in_p - in_features), (0, hid_p - hidden))).astype(cdt)
    w2_p = jnp.pad(w2, ((0, hid_p - hidden), (0, out_p - out_features))).astype(cdt)
    b1_p = jnp.pad(jnp.asarray(b1, jnp.float32).reshape(1, hidden),
                   ((0, 0), (0, hid_p - hidden)))
    b2_p = jnp.pad(jnp.asarray(b2, jnp.float32).reshape(1, out_features),
                   ((0, 0), (0, out_p - out_features)))
    return dict(w1=w1_p, b1=b1_p, w2=w2_p, b2=b2_p,
                in_features=in_features, hidden=hidden, out_features=out_features,
                compute_dtype=cdt)


def _pick_tile(total, target):
    """Largest multiple of 128 that divides `total` (itself a multiple of 128)
    and is <= target (floored at 128)."""
    target = max(128, min(int(target), total))
    best = 128
    t = 128
    while t <= target:
        if total % t == 0:
            best = t
        t += 128
    return best


def _vmem_need(tm, tk, tn, in_p, hid_p, out_p, cbytes, obytes):
    db = 2  # double buffering
    need = (db * tm * in_p + db * in_p * tk + db * tk * tn) * cbytes   # x, w1, w2 tiles
    need += db * (hid_p + out_p) * 4                                   # resident biases
    need += db * tm * out_p * obytes                                   # output tile
    need += tm * out_p * 4                                             # f32 accumulator
    need += tm * tk * cbytes + tm * tk * 4                             # h cache + fc1 temp
    return need


# --------------------------------------------------------------------------
# Forward
# --------------------------------------------------------------------------
def projector_apply(params, x, *, tm=512, tk=512, tn=1024,
                    approximate_gelu=False, vmem_limit_bytes=None):
    """y = fc2(gelu(fc1(x))) using pre-padded params from init_projector_params."""
    in_features = params["in_features"]
    out_features = params["out_features"]
    w1, b1, w2, b2 = params["w1"], params["b1"], params["w2"], params["b2"]
    cdt = params["compute_dtype"]
    cbytes = jnp.dtype(cdt).itemsize
    out_dtype = x.dtype
    obytes = jnp.dtype(out_dtype).itemsize

    *lead, in_feat_x = x.shape
    assert in_feat_x == in_features, "x last dim must equal in_features"
    m = 1
    for d in lead:
        m *= d

    in_p, hid_p = w1.shape
    out_p = w2.shape[1]

    # --- VMEM budget (clamped to physical capacity; v7x has only 64 MiB/core) ---
    try:
        vmem_cap = int(pltpu.get_tpu_info().vmem_capacity_bytes)
    except Exception:
        vmem_cap = 64 << 20        # conservative fallback (v7x-sized)
    budget = max(32 << 20, vmem_cap - (16 << 20))

    # --- Tile selection: shrink until the double-buffered footprint fits ---
    tm_eff = min(_round_up(m, 8), _round_up(tm, 8))
    tk_eff = _pick_tile(hid_p, tk)
    tn_eff = _pick_tile(out_p, tn)
    for _ in range(32):
        if _vmem_need(tm_eff, tk_eff, tn_eff, in_p, hid_p, out_p, cbytes, obytes) \
                <= 0.8 * budget:
            break
        c_tk = (2 * in_p + 2 * tn_eff) * tk_eff * cbytes + tm_eff * tk_eff * (cbytes + 4)
        c_tn = 2 * tk_eff * tn_eff * cbytes
        c_tm = 2 * tm_eff * in_p * cbytes + (2 * obytes + 4) * tm_eff * out_p \
               + tm_eff * tk_eff * (cbytes + 4)
        if c_tm >= max(c_tk, c_tn) and tm_eff > 8:
            tm_eff = max(8, _round_up(tm_eff // 2, 8))
        elif c_tk >= c_tn and tk_eff > 128:
            tk_eff = _pick_tile(hid_p, tk_eff // 2)
        elif tn_eff > 128:
            tn_eff = _pick_tile(out_p, tn_eff // 2)
        elif tk_eff > 128:
            tk_eff = _pick_tile(hid_p, tk_eff // 2)
        elif tm_eff > 8:
            tm_eff = max(8, _round_up(tm_eff // 2, 8))
        else:
            break

    # v7x megacore: give the 'parallel' row axis >= 2 tiles when the call is
    # big enough that the split is free.
    if m >= 64 and _round_up(m, tm_eff) // tm_eff < 2:
        tm_eff = max(8, _round_up((m + 1) // 2, 8))

    m_p = _round_up(max(m, 1), tm_eff)
    gm = m_p // tm_eff
    gk = hid_p // tk_eff
    gn = out_p // tn_eff

    if vmem_limit_bytes is None:
        need = _vmem_need(tm_eff, tk_eff, tn_eff, in_p, hid_p, out_p, cbytes, obytes)
        vmem_limit_bytes = int(min(max(32 << 20, 1.25 * need), budget))

    # --- Activations: pad per call (weights were padded once at init) ---
    x2d = x.reshape(m, in_features).astype(cdt)
    x_pad = jnp.pad(x2d, ((0, m_p - m), (0, in_p - in_features)))

    if gk == 1 and gn == 1:
        # Fused fast path: no accumulator round trip, fully resident weights.
        kernel = functools.partial(_projector_kernel_fused,
                                   compute_dtype=cdt, approximate=approximate_gelu)
        grid = (gm,)
        in_specs = [
            pl.BlockSpec((tm_eff, in_p), lambda i: (i, 0)),
            pl.BlockSpec((in_p, hid_p), lambda i: (0, 0)),
            pl.BlockSpec((1, hid_p), lambda i: (0, 0)),
            pl.BlockSpec((hid_p, out_p), lambda i: (0, 0)),
            pl.BlockSpec((1, out_p), lambda i: (0, 0)),
        ]
        out_specs = pl.BlockSpec((tm_eff, out_p), lambda i: (i, 0))
        scratch_shapes = []
        dim_sem = ("parallel",)
    else:
        kernel = functools.partial(_projector_kernel_tiled,
                                   tk=tk_eff, tn=tn_eff,
                                   compute_dtype=cdt, approximate=approximate_gelu)
        grid = (gm, gk, gn)
        in_specs = [
            pl.BlockSpec((tm_eff, in_p), lambda i, k, n: (i, 0)),
            pl.BlockSpec((in_p, tk_eff), lambda i, k, n: (0, k)),
            pl.BlockSpec((1, hid_p), lambda i, k, n: (0, 0)),      # b1 resident
            pl.BlockSpec((tk_eff, tn_eff), lambda i, k, n: (k, n)),
            pl.BlockSpec((1, out_p), lambda i, k, n: (0, 0)),      # b2 resident
        ]
        out_specs = pl.BlockSpec((tm_eff, out_p), lambda i, k, n: (i, 0))
        scratch_shapes = [pltpu.VMEM((tm_eff, tk_eff), cdt),         # GELU(fc1) cache
                          pltpu.VMEM((tm_eff, out_p), jnp.float32)]  # fc2 accumulator
        dim_sem = ("parallel", "arbitrary", "arbitrary")

    out2d = pl.pallas_call(
        kernel,
        out_shape=jax.ShapeDtypeStruct((m_p, out_p), out_dtype),
        grid_spec=pltpu.PrefetchScalarGridSpec(
            num_scalar_prefetch=0,
            grid=grid,
            in_specs=in_specs,
            out_specs=out_specs,
            scratch_shapes=scratch_shapes,
        ),
        compiler_params=pltpu.CompilerParams(
            dimension_semantics=dim_sem,
            vmem_limit_bytes=vmem_limit_bytes,
        ),
    )(x_pad, w1, b1, w2, b2)

    return out2d[:m, :out_features].reshape(*lead, out_features)


def projector_forward(x, w1, b1, w2, b2, *, compute_dtype=None, **kwargs):
    """Convenience wrapper that pads per call.  Prefer init_projector_params +
    projector_apply to hoist the weight padding/cast out of the hot path."""
    params = init_projector_params(w1, b1, w2, b2, compute_dtype=compute_dtype)
    return projector_apply(params, x, **kwargs)


# --------------------------------------------------------------------------
# Self test
# --------------------------------------------------------------------------
if __name__ == "__main__":
    def reference(x, w1, b1, w2, b2):
        hp = lax.Precision.HIGHEST
        x2 = x.reshape(-1, x.shape[-1])
        h = jnp.dot(x2, w1, precision=hp) + b1.reshape(1, -1)
        h = 0.5 * h * (1.0 + lax.erf(h * _INV_SQRT2))
        y = jnp.dot(h, w2, precision=hp) + b2.reshape(1, -1)
        return y.reshape(*x.shape[:-1], w2.shape[1])

    key = jax.random.PRNGKey(0)

    # --- Test 1: module-sized shapes (batch=2, seq=8, in=32, hidden=64, out=32),
    #             exact f32 path -> fused fast-path kernel. ---
    batch, seq = 2, 8
    in_features, hidden_size, out_features = 32, 64, 32
    k0, k1, k2, k3, k4, key = jax.random.split(key, 6)
    x = jax.random.normal(k0, (batch, seq, in_features), dtype=jnp.float32)
    w1 = jax.random.normal(k1, (in_features, hidden_size), dtype=jnp.float32) * 0.05
    b1 = jax.random.normal(k2, (hidden_size,), dtype=jnp.float32) * 0.01
    w2 = jax.random.normal(k3, (hidden_size, out_features), dtype=jnp.float32) * 0.05
    b2 = jax.random.normal(k4, (out_features,), dtype=jnp.float32) * 0.01

    params = init_projector_params(w1, b1, w2, b2)   # pad once (hoisted out of hot path)
    y = jax.block_until_ready(projector_apply(params, x))
    y_ref = reference(x, w1, b1, w2, b2)
    assert y.shape == y_ref.shape
    assert jnp.allclose(y, y_ref, atol=1e-5, rtol=1e-5)

    # --- Test 2: force the tiled (rows x hidden-chunk x out-chunk) kernel. ---
    m2, in2, hid2, out2 = 32, 128, 256, 256
    k0, k1, k2, k3, k4, key = jax.random.split(key, 6)
    x2 = jax.random.normal(k0, (m2, in2), dtype=jnp.float32)
    w1b = jax.random.normal(k1, (in2, hid2), dtype=jnp.float32) * 0.05
    b1b = jax.random.normal(k2, (hid2,), dtype=jnp.float32) * 0.01
    w2b = jax.random.normal(k3, (hid2, out2), dtype=jnp.float32) * 0.05
    b2b = jax.random.normal(k4, (out2,), dtype=jnp.float32) * 0.01

    params2 = init_projector_params(w1b, b1b, w2b, b2b)
    y2 = jax.block_until_ready(projector_apply(params2, x2, tm=16, tk=128, tn=128))
    y2_ref = reference(x2, w1b, b1b, w2b, b2b)
    assert jnp.allclose(y2, y2_ref, atol=1e-4, rtol=1e-4)

    # --- Test 3: bf16 compute path (f32 accumulation), tiled kernel. ---
    params3 = init_projector_params(w1b, b1b, w2b, b2b, compute_dtype=jnp.bfloat16)
    y3 = jax.block_until_ready(projector_apply(params3, x2, tm=16, tk=128, tn=128))
    assert y3.dtype == x2.dtype
    assert jnp.allclose(y3, y2_ref, atol=5e-2, rtol=5e-2)

    print("KERNEL_OK")
</pallas_src>

<mosaic_0001>
module attributes {stable_mosaic.version = 11 : i64} {
  func.func @_projector_kernel_fused(%arg0: i32, %arg1: memref<16x128xf32, #tpu.memory_space<vmem>>, %arg2: memref<128x128xf32, #tpu.memory_space<vmem>>, %arg3: memref<1x128xf32, #tpu.memory_space<vmem>>, %arg4: memref<128x128xf32, #tpu.memory_space<vmem>>, %arg5: memref<1x128xf32, #tpu.memory_space<vmem>>, %arg6: memref<16x128xf32, #tpu.memory_space<vmem>>) attributes {dimension_semantics = [#tpu.dimension_semantics<parallel>], iteration_bounds = array<i64: 1>, scalar_prefetch = 0 : i64, scratch_operands = 0 : i64, tpu.core_type = #tpu.core_type<tc>, window_params = [{transform_indices = @transform_0, window_bounds = array<i64: 16, 128>}, {pipeline_mode = #tpu.pipeline_mode<synchronous>, transform_indices = @transform_1, window_bounds = array<i64: 128, 128>}, {pipeline_mode = #tpu.pipeline_mode<synchronous>, transform_indices = @transform_2, window_bounds = array<i64: 1, 128>}, {pipeline_mode = #tpu.pipeline_mode<synchronous>, transform_indices = @transform_3, window_bounds = array<i64: 128, 128>}, {pipeline_mode = #tpu.pipeline_mode<synchronous>, transform_indices = @transform_4, window_bounds = array<i64: 1, 128>}, {transform_indices = @transform_5, window_bounds = array<i64: 16, 128>}]} {
    %c0 = arith.constant 0 : index
    %c0_0 = arith.constant 0 : index
    %0 = vector.load %arg1[%c0, %c0_0] : memref<16x128xf32, #tpu.memory_space<vmem>>, vector<16x128xf32>
    %c0_1 = arith.constant 0 : index
    %c0_2 = arith.constant 0 : index
    %1 = vector.load %arg2[%c0_1, %c0_2] : memref<128x128xf32, #tpu.memory_space<vmem>>, vector<128x128xf32>
    %cst = arith.constant dense<0.000000e+00> : vector<16x128xf32>
    %2 = tpu.matmul %0, %1, %cst {dimension_numbers = #tpu.dot_dimension_numbers<[1], [0], [0], [1], [0, 0, 1, 1], [], []>} : vector<16x128xf32>, vector<128x128xf32>, vector<16x128xf32> -> vector<16x128xf32>
    %c0_3 = arith.constant 0 : index
    %c0_4 = arith.constant 0 : index
    %3 = vector.load %arg3[%c0_3, %c0_4] : memref<1x128xf32, #tpu.memory_space<vmem>>, vector<1x128xf32>
    %4 = vector.broadcast %3 : vector<1x128xf32> to vector<16x128xf32>
    %5 = arith.addf %2, %4 : vector<16x128xf32>
    %cst_5 = arith.constant 5.000000e-01 : f32
    %6 = vector.broadcast %cst_5 : f32 to vector<16x128xf32>
    %7 = arith.mulf %6, %5 : vector<16x128xf32>
    %cst_6 = arith.constant 0.707106769 : f32
    %8 = vector.broadcast %cst_6 : f32 to vector<16x128xf32>
    %9 = arith.mulf %5, %8 : vector<16x128xf32>
    %10 = math.erf %9 : vector<16x128xf32>
    %cst_7 = arith.constant 1.000000e+00 : f32
    %11 = vector.broadcast %cst_7 : f32 to vector<16x128xf32>
    %12 = arith.addf %11, %10 : vector<16x128xf32>
    %13 = arith.mulf %7, %12 : vector<16x128xf32>
    %c0_8 = arith.constant 0 : index
    %c0_9 = arith.constant 0 : index
    %14 = vector.load %arg4[%c0_8, %c0_9] : memref<128x128xf32, #tpu.memory_space<vmem>>, vector<128x128xf32>
    %cst_10 = arith.constant dense<0.000000e+00> : vector<16x128xf32>
    %15 = tpu.matmul %13, %14, %cst_10 {dimension_numbers = #tpu.dot_dimension_numbers<[1], [0], [0], [1], [0, 0, 1, 1], [], []>} : vector<16x128xf32>, vector<128x128xf32>, vector<16x128xf32> -> vector<16x128xf32>
    %c0_11 = arith.constant 0 : index
    %c0_12 = arith.constant 0 : index
    %16 = vector.load %arg5[%c0_11, %c0_12] : memref<1x128xf32, #tpu.memory_space<vmem>>, vector<1x128xf32>
    %17 = vector.broadcast %16 : vector<1x128xf32> to vector<16x128xf32>
    %18 = arith.addf %15, %17 : vector<16x128xf32>
    %c0_13 = arith.constant 0 : index
    %c0_14 = arith.constant 0 : index
    %19 = vector.load %arg6[%c0_13, %c0_14] : memref<16x128xf32, #tpu.memory_space<vmem>>, vector<16x128xf32>
    tpu.vector_store %arg6[%c0_13, %c0_14], %18 {strides = array<i32>} : memref<16x128xf32, #tpu.memory_space<vmem>>, vector<16x128xf32>,
    return
  }
  func.func @transform_0(%arg0: i32) -> (i32, i32) {
    %c0_i32 = arith.constant 0 : i32
    %c0_i32_0 = arith.constant 0 : i32
    return %arg0, %c0_i32 : i32, i32
  }
  func.func @transform_1(%arg0: i32) -> (i32, i32) {
    %c0_i32 = arith.constant 0 : i32
    %c0_i32_0 = arith.constant 0 : i32
    %c0_i32_1 = arith.constant 0 : i32
    return %c0_i32, %c0_i32_0 : i32, i32
  }
  func.func @transform_2(%arg0: i32) -> (i32, i32) {
    %c0_i32 = arith.constant 0 : i32
    %c0_i32_0 = arith.constant 0 : i32
    %c0_i32_1 = arith.constant 0 : i32
    return %c0_i32, %c0_i32_0 : i32, i32
  }
  func.func @transform_3(%arg0: i32) -> (i32, i32) {
    %c0_i32 = arith.constant 0 : i32
    %c0_i32_0 = arith.constant 0 : i32
    %c0_i32_1 = arith.constant 0 : i32
    return %c0_i32, %c0_i32_0 : i32, i32
  }
  func.func @transform_4(%arg0: i32) -> (i32, i32) {
    %c0_i32 = arith.constant 0 : i32
    %c0_i32_0 = arith.constant 0 : i32
    %c0_i32_1 = arith.constant 0 : i32
    return %c0_i32, %c0_i32_0 : i32, i32
  }
  func.func @transform_5(%arg0: i32) -> (i32, i32) {
    %c0_i32 = arith.constant 0 : i32
    %c0_i32_0 = arith.constant 0 : i32
    return %arg0, %c0_i32 : i32, i32
  }
}

</mosaic_0001>

<llo_original>
// kernel: tpu_custom_call.1
$region0: #{tpu_custom_call.1}
  #allocation0 [shape = 'u32[]', space=smem, size = 0x4, offset = 0x4, fixed_abs, tag = 'smem constant byte address 0x4 - core index']
  #allocation1 [shape = 'u32[72,128]{1,0:T(1,128)}', space=vmem, size = 0x9000, scoped, tag = 'internal scratch']
  %s0 = inlined_call_operand.hbm [shape: f32[16,128], index: 0, kind: input, shape index: {}]
  %s1 = inlined_call_operand.hbm [shape: f32[128,128], index: 1, kind: input, shape index: {}]
  %s2 = inlined_call_operand.vmem [shape: f32[1,128], index: 2, kind: input, shape index: {}]
  %s3 = inlined_call_operand.hbm [shape: f32[128,128], index: 3, kind: input, shape index: {}]
  %s4 = inlined_call_operand.vmem [shape: f32[1,128], index: 4, kind: input, shape index: {}]
  %s5 = inlined_call_operand.hbm [shape: f32[16,128], index: 5, kind: output, shape index: {}]
  %s6 = sld [smem:[#allocation0]]
  $region42: #{tpu_custom_call.1} parent=0
    _
  %s8 = ssub.s32 1, %s6
  %s9 = scalar_select 0, %s8, %s6
  $region1: #{tpu_custom_call.1} parent=0
    #allocation2 [shape = 'u8[8192]{0}', space=vmem, size = 0x2000, scoped, tag = 'input window, operand 0, single buffered']
    #allocation3 [shape = 's32[1]{0}', space=sflag, size = 0x4, scoped, tag = 'scoped memory for tpu_custom_call.1']
    #allocation4 [shape = 's32[1]{0}', space=sflag, size = 0x4, scoped, tag = 'scoped memory for tpu_custom_call.1']
    #allocation5 [shape = 'u8[65536]{0}', space=vmem, size = 0x10000, scoped, tag = 'input window, operand 1, single buffered']
    #allocation6 [shape = 's32[1]{0}', space=sflag, size = 0x4, scoped, tag = 'scoped memory for tpu_custom_call.1']
    #allocation7 [shape = 'u8[65536]{0}', space=vmem, size = 0x10000, scoped, tag = 'input window, operand 3, single buffered']
    #allocation8 [shape = 'u8[8192]{0}', space=vmem, size = 0x2000, scoped, tag = 'output window, operand 0, single buffered']
    %10 = vsyncpa [#allocation3], 0
    %11 = vsyncpa [#allocation6], 0
    %12 = vsyncpa [#allocation4], 0
    // Predicated region
    $region2: #{tpu_custom_call.1} parent=1 // pred_check
      _
    $region3: #{tpu_custom_call.1} parent=1 // pred_check_branch
      %14 = sbr.rel (0) target = $region5
    $region4: #{tpu_custom_call.1} parent=1 // pred_region
      %16 = vsyncadd [#allocation3], 0
      %s17 = sshll.u32 %s0, 4
      %s18 = int_to_ptr.hbm [resolvable:$true] %s17
      %s19 = sshll.u32 [#allocation2], 4
      %s20 = int_to_ptr.vmem [resolvable:$true] %s19
      %25 = dma.hbm_to_vmem [thread:$0]  %s18, 256, %s20, [#allocation3], 128, 128, 8
    $region5: #{tpu_custom_call.1} parent=1 // pred_fallthru
      _
    // Predicated region
    $region6: #{tpu_custom_call.1} parent=1 // pred_check
      _
    $region7: #{tpu_custom_call.1} parent=1 // pred_check_branch
      %27 = sbr.rel (0) target = $region9
    $region8: #{tpu_custom_call.1} parent=1 // pred_region
      %29 = vsyncadd [#allocation6], 0
      %s30 = sshll.u32 %s1, 4
      %s31 = int_to_ptr.hbm [resolvable:$true] %s30
      %s32 = sshll.u32 [#allocation5], 4
      %s33 = int_to_ptr.vmem [resolvable:$true] %s32
      %38 = dma.hbm_to_vmem [thread:$0]  %s31, 2048, %s33, [#allocation6], 128, 128, 8
    $region9: #{tpu_custom_call.1} parent=1 // pred_fallthru
      _
    // Predicated region
    $region10: #{tpu_custom_call.1} parent=1 // pred_check
      _
    $region11: #{tpu_custom_call.1} parent=1 // pred_check_branch
      %40 = sbr.rel (0) target = $region13
    $region12: #{tpu_custom_call.1} parent=1 // pred_region
      _
    $region13: #{tpu_custom_call.1} parent=1 // pred_fallthru
      _
    // Predicated region
    $region14: #{tpu_custom_call.1} parent=1 // pred_check
      _
    $region15: #{tpu_custom_call.1} parent=1 // pred_check_branch
      %42 = sbr.rel (0) target = $region17
    $region16: #{tpu_custom_call.1} parent=1 // pred_region
      %44 = vsyncadd [#allocation6], 0
      %s45 = sshll.u32 %s3, 4
      %s46 = int_to_ptr.hbm [resolvable:$true] %s45
      %s47 = sshll.u32 [#allocation7], 4
      %s48 = int_to_ptr.vmem [resolvable:$true] %s47
      %53 = dma.hbm_to_vmem [thread:$0]  %s46, 2048, %s48, [#allocation6], 128, 128, 8
    $region17: #{tpu_custom_call.1} parent=1 // pred_fallthru
      _
    // Predicated region
    $region18: #{tpu_custom_call.1} parent=1 // pred_check
      _
    $region19: #{tpu_custom_call.1} parent=1 // pred_check_branch
      %55 = sbr.rel (0) target = $region21
    $region20: #{tpu_custom_call.1} parent=1 // pred_region
      _
    $region21: #{tpu_custom_call.1} parent=1 // pred_fallthru
      _
    // Predicated region
    $region22: #{tpu_custom_call.1} parent=1 // pred_check
      _
    $region23: #{tpu_custom_call.1} parent=1 // pred_check_branch
      %57 = sbr.rel (0) target = $region25
    $region24: #{tpu_custom_call.1} parent=1 // pred_region
      %59 = dma.done [#allocation3], 256
    $region25: #{tpu_custom_call.1} parent=1 // pred_fallthru
      _
    // Predicated region
    $region26: #{tpu_custom_call.1} parent=1 // pred_check
      _
    $region27: #{tpu_custom_call.1} parent=1 // pred_check_branch
      %61 = sbr.rel (0) target = $region29
    $region28: #{tpu_custom_call.1} parent=1 // pred_region
      %63 = dma.done [#allocation6], 2048
    $region29: #{tpu_custom_call.1} parent=1 // pred_fallthru
      _
    // Predicated region
    $region30: #{tpu_custom_call.1} parent=1 // pred_check
      _
    $region31: #{tpu_custom_call.1} parent=1 // pred_check_branch
      %65 = sbr.rel (0) target = $region33
    $region32: #{tpu_custom_call.1} parent=1 // pred_region
      %67 = dma.done [#allocation6], 2048
    $region33: #{tpu_custom_call.1} parent=1 // pred_fallthru
      _
    %v68 = vld [vmem:[#allocation2] sm:$0xff]
    %v69 = vld [vmem:[#allocation2 + $0x8] sm:$0xff]
    %v70 = vld [vmem:[#allocation5] sm:$0xff]
    %v71 = vld [vmem:[#allocation5 + $0x8] sm:$0xff]
    %v72 = vld [vmem:[#allocation5 + $0x10] sm:$0xff]
    %v73 = vld [vmem:[#allocation5 + $0x18] sm:$0xff]
    %v74 = vld [vmem:[#allocation5 + $0x20] sm:$0xff]
    %v75 = vld [vmem:[#allocation5 + $0x28] sm:$0xff]
    %v76 = vld [vmem:[#allocation5 + $0x30] sm:$0xff]
    %v77 = vld [vmem:[#allocation5 + $0x38] sm:$0xff]
    %v78 = vld [vmem:[#allocation5 + $0x40] sm:$0xff]
    %v79 = vld [vmem:[#allocation5 + $0x48] sm:$0xff]
    %v80 = vld [vmem:[#allocation5 + $0x50] sm:$0xff]
    %v81 = vld [vmem:[#allocation5 + $0x58] sm:$0xff]
    %v82 = vld [vmem:[#allocation5 + $0x60] sm:$0xff]
    %v83 = vld [vmem:[#allocation5 + $0x68] sm:$0xff]
    %v84 = vld [vmem:[#allocation5 + $0x70] sm:$0xff]
    %v85 = vld [vmem:[#allocation5 + $0x78] sm:$0xff]
    %v86 = vld [vmem:[%s2] sm:$0x1]
    %v88 = vperm.slane %v86, 0
    %90 = vmatpush.msra.mxu0 %v85
    %91 = vmatpush.msra.mxu0 %v84
    %92 = vmatpush.msra.mxu0 %v83
    %93 = vmatpush.msra.mxu0 %v82
    %94 = vmatpush.msra.mxu0 %v81
    %95 = vmatpush.msra.mxu0 %v80
    %96 = vmatpush.msra.mxu0 %v79
    %97 = vmatpush.msra.mxu0 %v78
    %98 = vmatpush.msra.mxu0 %v77
    %99 = vmatpush.msra.mxu0 %v76
    %100 = vmatpush.msra.mxu0 %v75
    %101 = vmatpush.msra.mxu0 %v74
    %102 = vmatpush.msra.mxu0 %v73
    %103 = vmatpush.msra.mxu0 %v72
    %104 = vmatpush.msra.mxu0 %v71
    %105 = vmatpush.msra.mxu0 %v70
    %106 = vmatmul.f32.gmra.mxu0 %v68
    %v107 = vpop.f32.mrf.mxu0
    %v108 = vadd.f32 %v88, %v107
    %109 = vmatmul.f32.gmra.mxu0 %v69
    %v110 = vpop.f32.mrf.mxu0
    %v111 = vadd.f32 %v88, %v110
    %112 = vdwg.mxu0
    %v113 = vmul.f32 %v108, 0.5
    %v114 = vmul.f32 %v111, 0.5
    %v115 = vmul.f32 %v108, 0.70710677
    %v116 = vmul.f32 %v111, 0.70710677
    %v117 = vmul.f32 %v115, %v115
    %v118 = vmin.f32 16.0, %v117
    %v119 = vmul.f32 %v118, 2.1237322e-06
    %v120 = vadd.f32 %v119, 0.00028619796
    %v121 = vmul.f32 %v118, %v120
    %v122 = vadd.f32 %v121, 0.0036580483
    %v123 = vmul.f32 %v118, %v122
    %v124 = vadd.f32 %v123, 0.05243302
    %v125 = vmul.f32 %v118, %v124
    %v126 = vadd.f32 %v125, 0.18741608
    %v127 = vmul.f32 %v118, %v126
    %v128 = vadd.f32 %v127, 1.1283791
    %v129 = vmul.f32 %v115, %v128
    %v130 = vmul.f32 %v118, 3.8918573e-05
    %v131 = vadd.f32 %v130, 0.001143296
    %v132 = vmul.f32 %v118, %v131
    %v133 = vadd.f32 %v132, 0.014752088
    %v134 = vmul.f32 %v118, %v133
    %v135 = vadd.f32 %v134, 0.112945676
    %v136 = vmul.f32 %v118, %v135
    %v137 = vadd.f32 %v136, 0.4994258
    %v138 = vmul.f32 %v118, %v137
    %v139 = vadd.f32 %v138, 1.0
    %v140 = vrcp.pop %v139
    %v141 = vmul.f32 %v139, %v140
    %v142 = vsub.f32 1.0, %v141
    %v143 = vmul.f32 %v140, %v142
    %v144 = vadd.f32 %v140, %v143
    %vm145 = vweird.f32 %v139
    %vm146 = vweird.f32 %v140
    %vm147 = vmor %vm145, %vm146
    %v148 = vsel %vm147, %v140, %v144
    %v149 = vand.u32 2147483647, %v139
    %vm150 = vcmp.eq.f32.partialorder %v149, 8.507059e+37
    %v151 = vand.u32 %v139, 2147483648
    %v152 = vor.u32 1.1754944e-38, %v151
    %v153 = vsel %vm150, %v152, %v148
    %v154 = vmul.f32 %v129, %v153
    %v155 = vmin.f32 %v154, 1.0
    %v156 = vmax.f32 %v155, -1.0
    %v157 = vmul.f32 %v116, %v116
    %v158 = vmin.f32 16.0, %v157
    %v159 = vmul.f32 %v158, 2.1237322e-06
    %v160 = vadd.f32 %v159, 0.00028619796
    %v161 = vmul.f32 %v158, %v160
    %v162 = vadd.f32 %v161, 0.0036580483
    %v163 = vmul.f32 %v158, %v162
    %v164 = vadd.f32 %v163, 0.05243302
    %v165 = vmul.f32 %v158, %v164
    %v166 = vadd.f32 %v165, 0.18741608
    %v167 = vmul.f32 %v158, %v166
    %v168 = vadd.f32 %v167, 1.1283791
    %v169 = vmul.f32 %v116, %v168
    %v170 = vmul.f32 %v158, 3.8918573e-05
    %v171 = vadd.f32 %v170, 0.001143296
    %v172 = vmul.f32 %v158, %v171
    %v173 = vadd.f32 %v172, 0.014752088
    %v174 = vmul.f32 %v158, %v173
    %v175 = vadd.f32 %v174, 0.112945676
    %v176 = vmul.f32 %v158, %v175
    %v177 = vadd.f32 %v176, 0.4994258
    %v178 = vmul.f32 %v158, %v177
    %v179 = vadd.f32 %v178, 1.0
    %v180 = vrcp.pop %v179
    %v181 = vmul.f32 %v179, %v180
    %v182 = vsub.f32 1.0, %v181
    %v183 = vmul.f32 %v180, %v182
    %v184 = vadd.f32 %v180, %v183
    %vm185 = vweird.f32 %v179
    %vm186 = vweird.f32 %v180
    %vm187 = vmor %vm185, %vm186
    %v188 = vsel %vm187, %v180, %v184
    %v189 = vand.u32 2147483647, %v179
    %vm190 = vcmp.eq.f32.partialorder %v189, 8.507059e+37
    %v191 = vand.u32 %v179, 2147483648
    %v192 = vor.u32 1.1754944e-38, %v191
    %v193 = vsel %vm190, %v192, %v188
    %v194 = vmul.f32 %v169, %v193
    %v195 = vmin.f32 %v194, 1.0
    %v196 = vmax.f32 %v195, -1.0
    %v197 = vadd.f32 %v156, 1.0
    %v198 = vadd.f32 %v196, 1.0
    %v199 = vmul.f32 %v113, %v197
    %v200 = vmul.f32 %v114, %v198
    %v201 = vld [vmem:[#allocation7] sm:$0xff]
    %v202 = vld [vmem:[#allocation7 + $0x8] sm:$0xff]
    %v203 = vld [vmem:[#allocation7 + $0x10] sm:$0xff]
    %v204 = vld [vmem:[#allocation7 + $0x18] sm:$0xff]
    %v205 = vld [vmem:[#allocation7 + $0x20] sm:$0xff]
    %v206 = vld [vmem:[#allocation7 + $0x28] sm:$0xff]
    %v207 = vld [vmem:[#allocation7 + $0x30] sm:$0xff]
    %v208 = vld [vmem:[#allocation7 + $0x38] sm:$0xff]
    %v209 = vld [vmem:[#allocation7 + $0x40] sm:$0xff]
    %v210 = vld [vmem:[#allocation7 + $0x48] sm:$0xff]
    %v211 = vld [vmem:[#allocation7 + $0x50] sm:$0xff]
    %v212 = vld [vmem:[#allocation7 + $0x58] sm:$0xff]
    %v213 = vld [vmem:[#allocation7 + $0x60] sm:$0xff]
    %v214 = vld [vmem:[#allocation7 + $0x68] sm:$0xff]
    %v215 = vld [vmem:[#allocation7 + $0x70] sm:$0xff]
    %v216 = vld [vmem:[#allocation7 + $0x78] sm:$0xff]
    %v217 = vld [vmem:[%s4] sm:$0x1]
    %v219 = vperm.slane %v217, 0
    %221 = vmatpush.msra.mxu0 %v216
    %222 = vmatpush.msra.mxu0 %v215
    %223 = vmatpush.msra.mxu0 %v214
    %224 = vmatpush.msra.mxu0 %v213
    %225 = vmatpush.msra.mxu0 %v212
    %226 = vmatpush.msra.mxu0 %v211
    %227 = vmatpush.msra.mxu0 %v210
    %228 = vmatpush.msra.mxu0 %v209
    %229 = vmatpush.msra.mxu0 %v208
    %230 = vmatpush.msra.mxu0 %v207
    %231 = vmatpush.msra.mxu0 %v206
    %232 = vmatpush.msra.mxu0 %v205
    %233 = vmatpush.msra.mxu0 %v204
    %234 = vmatpush.msra.mxu0 %v203
    %235 = vmatpush.msra.mxu0 %v202
    %236 = vmatpush.msra.mxu0 %v201
    %237 = vmatmul.f32.gmra.mxu0 %v199
    %v238 = vpop.f32.mrf.mxu0
    %v239 = vadd.f32 %v219, %v238
    %240 = vmatmul.f32.gmra.mxu0 %v200
    %v241 = vpop.f32.mrf.mxu0
    %v242 = vadd.f32 %v219, %v241
    %243 = vdwg.mxu0
    %244 = vst [vmem:[#allocation8] sm:$0xff] %v239
    %245 = vst [vmem:[#allocation8 + $0x8] sm:$0xff] %v242
    // Predicated region
    $region34: #{tpu_custom_call.1} parent=1 // pred_check
      _
    $region35: #{tpu_custom_call.1} parent=1 // pred_check_branch
      %247 = sbr.rel (0) target = $region37
    $region36: #{tpu_custom_call.1} parent=1 // pred_region
      %249 = vsyncadd [#allocation4], 0
      %s250 = sshll.u32 [#allocation8], 4
      %s251 = int_to_ptr.vmem [resolvable:$true] %s250
      %s252 = sshll.u32 %s5, 4
      %s253 = int_to_ptr.hbm [resolvable:$true] %s252
      %258 = dma.vmem_to_hbm [thread:$0]  %s251, 256, %s253, [#allocation4], 128, 128, 8
    $region37: #{tpu_custom_call.1} parent=1 // pred_fallthru
      _
    // Predicated region
    $region38: #{tpu_custom_call.1} parent=1 // pred_check
      _
    $region39: #{tpu_custom_call.1} parent=1 // pred_check_branch
      %260 = sbr.rel (0) target = $region41
    $region40: #{tpu_custom_call.1} parent=1 // pred_region
      %262 = dma.done [#allocation4], 256
    $region41: #{tpu_custom_call.1} parent=1 // pred_fallthru
      _
    %263 = vsyncpa [#allocation3], 1
    %264 = vsyncpa [#allocation6], 1
    %265 = vsyncpa [#allocation4], 1

</llo_original>
